<compile_context>
chip_gen: v7x
topology: tpu7x:2x2x1
jax: 0.10.0
libtpu: 0.0.40
codegen_flags: <defaults>
</compile_context>

<pallas_src>
import numpy as np
import jax
import jax.numpy as jnp
from jax.experimental import pallas as pl
from jax.experimental.pallas import tpu as pltpu

_LANES = 128
_SUBLANE = 16  # multiple of 8 (f32) and 16 (bf16 sublane packing)


def compute_class_balance_weights(samples_per_cls, beta=0.9999):
    """Same math as the PyTorch helper, in numpy (done once at setup)."""
    samples_per_cls = np.asarray(samples_per_cls, dtype=np.float64)
    effective_num = 1.0 - np.power(beta, samples_per_cls)
    weights = (1.0 - beta) / effective_num
    weights = weights / np.sum(weights)
    return jnp.asarray(weights, dtype=jnp.float32)


def _round_up(x, m):
    return ((x + m - 1) // m) * m


def _cb_bce_kernel(pred_ref, target_ref, sw_ref, out_ref):
    # pred_ref/target_ref/sw_ref/out_ref: (TN, 128) lane-dense tiles.
    x = pred_ref[...].astype(jnp.float32)
    z = target_ref[...].astype(jnp.float32)
    sw = sw_ref[...].astype(jnp.float32)
    # binary_cross_entropy_with_logits, reduction='none' (numerically stable):
    #   loss = max(x, 0) - x * z + log(1 + exp(-|x|))
    bce = jnp.maximum(x, 0.0) - x * z + jnp.log1p(jnp.exp(-jnp.abs(x)))
    out_ref[...] = (sw * bce).astype(out_ref.dtype)


def cb_bce_loss(pred_score, target, labels_one_hot, weights, *,
                row_tile=512, reduction="none"):
    """Class-balanced BCE with logits. reduction='none' returns [N, C]."""
    N, C = pred_score.shape
    out_dtype = pred_score.dtype

    # Hoist the class-balance reduction out of the kernel:
    #   sample_w[n] = sum_c weights[c] * one_hot[n, c]
    sample_w = jnp.sum(weights[None, :].astype(jnp.float32)
                       * labels_one_hot.astype(jnp.float32),
                       axis=1, keepdims=True)                        # (N, 1)
    sample_w = jnp.broadcast_to(sample_w, (N, C)).astype(out_dtype)  # (N, C)

    # Lane-dense repack: flatten [N, C] -> [rows, 128] (row-major, free).
    total = N * C
    rows = _round_up(total, _LANES) // _LANES
    tile_rows = max(_SUBLANE, _round_up(min(row_tile, rows), _SUBLANE))
    padded_rows = _round_up(rows, tile_rows)
    padded_total = padded_rows * _LANES

    def repack(a):
        flat = a.reshape(-1)
        flat = jnp.pad(flat, (0, padded_total - total))
        return flat.reshape(padded_rows, _LANES)

    pred2 = repack(pred_score)
    targ2 = repack(target)
    sw2 = repack(sample_w)  # padded sample_w = 0 -> padded outputs are 0

    grid = (padded_rows // tile_rows,)
    spec = pl.BlockSpec((tile_rows, _LANES), lambda i: (i, 0))

    out2 = pl.pallas_call(
        _cb_bce_kernel,
        out_shape=jax.ShapeDtypeStruct((padded_rows, _LANES), out_dtype),
        grid=grid,
        in_specs=[spec, spec, spec],
        out_specs=spec,
        compiler_params=pltpu.CompilerParams(
            dimension_semantics=("parallel",),
            vmem_limit_bytes=32 * 1024 * 1024),
    )(pred2, targ2, sw2)

    out = out2.reshape(-1)[:total].reshape(N, C)

    if reduction == "mean":
        return jnp.mean(out)
    if reduction == "sum":
        return jnp.sum(out)
    if reduction == "log":
        return jnp.log1p(out)
    return out


def cb_bce_loss_ref(pred_score, target, labels_one_hot, weights):
    """Pure-JAX reference mirroring the PyTorch forward (reduction='none')."""
    sample_w = jnp.sum(weights[None, :] * labels_one_hot, axis=1, keepdims=True)
    x = pred_score.astype(jnp.float32)
    z = target.astype(jnp.float32)
    bce = jnp.maximum(x, 0.0) - x * z + jnp.log1p(jnp.exp(-jnp.abs(x)))
    return sample_w * bce


if __name__ == "__main__":
    # Module setup: samples_per_cls defines C (number of classes).
    samples_per_cls = [100, 250, 40, 600]  # C = 4
    weights = compute_class_balance_weights(samples_per_cls, beta=0.9999)

    N, C = 16, len(samples_per_cls)

    key = jax.random.PRNGKey(0)
    k1, k2, k3 = jax.random.split(key, 3)
    pred_score = jax.random.normal(k1, (N, C), dtype=jnp.float32)
    # soft targets in [0, 1], like YOLO-style cls targets
    target = jax.random.uniform(k2, (N, C), dtype=jnp.float32)
    # one-hot labels: one class active per sample
    labels = jax.random.randint(k3, (N,), 0, C)
    labels_one_hot = jax.nn.one_hot(labels, C, dtype=jnp.float32)

    # f32 path
    out = cb_bce_loss(pred_score, target, labels_one_hot, weights)
    out = jax.block_until_ready(out)
    ref = cb_bce_loss_ref(pred_score, target, labels_one_hot, weights)
    np.testing.assert_allclose(np.asarray(out), np.asarray(ref),
                               rtol=1e-5, atol=1e-5)

    # bf16 I/O path (half the HBM traffic): math still in f32 inside the kernel.
    pred_bf = pred_score.astype(jnp.bfloat16)
    targ_bf = target.astype(jnp.bfloat16)
    out_bf = cb_bce_loss(pred_bf, targ_bf, labels_one_hot, weights)
    out_bf = jax.block_until_ready(out_bf)
    ref_bf = cb_bce_loss_ref(pred_bf.astype(jnp.float32),
                             targ_bf.astype(jnp.float32),
                             labels_one_hot, weights)
    np.testing.assert_allclose(np.asarray(out_bf).astype(np.float32),
                               np.asarray(ref_bf), rtol=3e-2, atol=3e-2)

    print("KERNEL_OK")
</pallas_src>

<mosaic_0001>
module attributes {stable_mosaic.version = 11 : i64} {
  func.func @_cb_bce_kernel(%arg0: i32, %arg1: memref<16x128xf32, #tpu.memory_space<vmem>>, %arg2: memref<16x128xf32, #tpu.memory_space<vmem>>, %arg3: memref<16x128xf32, #tpu.memory_space<vmem>>, %arg4: memref<16x128xf32, #tpu.memory_space<vmem>>) attributes {dimension_semantics = [#tpu.dimension_semantics<parallel>], iteration_bounds = array<i64: 1>, scalar_prefetch = 0 : i64, scratch_operands = 0 : i64, tpu.core_type = #tpu.core_type<tc>, window_params = [{transform_indices = @transform_0, window_bounds = array<i64: 16, 128>}, {transform_indices = @transform_1, window_bounds = array<i64: 16, 128>}, {transform_indices = @transform_2, window_bounds = array<i64: 16, 128>}, {transform_indices = @transform_3, window_bounds = array<i64: 16, 128>}]} {
    %c0 = arith.constant 0 : index
    %c0_0 = arith.constant 0 : index
    %0 = vector.load %arg1[%c0, %c0_0] : memref<16x128xf32, #tpu.memory_space<vmem>>, vector<16x128xf32>
    %c0_1 = arith.constant 0 : index
    %c0_2 = arith.constant 0 : index
    %1 = vector.load %arg2[%c0_1, %c0_2] : memref<16x128xf32, #tpu.memory_space<vmem>>, vector<16x128xf32>
    %c0_3 = arith.constant 0 : index
    %c0_4 = arith.constant 0 : index
    %2 = vector.load %arg3[%c0_3, %c0_4] : memref<16x128xf32, #tpu.memory_space<vmem>>, vector<16x128xf32>
    %cst = arith.constant 0.000000e+00 : f32
    %3 = vector.broadcast %cst : f32 to vector<16x128xf32>
    %4 = arith.maximumf %0, %3 : vector<16x128xf32>
    %5 = arith.mulf %0, %1 : vector<16x128xf32>
    %6 = arith.subf %4, %5 : vector<16x128xf32>
    %7 = math.absf %0 : vector<16x128xf32>
    %cst_5 = arith.constant 0.000000e+00 : f32
    %8 = vector.broadcast %cst_5 : f32 to vector<16x128xf32>
    %9 = arith.subf %8, %7 : vector<16x128xf32>
    %10 = math.exp %9 : vector<16x128xf32>
    %11 = math.log1p %10 : vector<16x128xf32>
    %12 = arith.addf %6, %11 : vector<16x128xf32>
    %13 = arith.mulf %2, %12 : vector<16x128xf32>
    %c0_6 = arith.constant 0 : index
    %c0_7 = arith.constant 0 : index
    %14 = vector.load %arg4[%c0_6, %c0_7] : memref<16x128xf32, #tpu.memory_space<vmem>>, vector<16x128xf32>
    tpu.vector_store %arg4[%c0_6, %c0_7], %13 {strides = array<i32>} : memref<16x128xf32, #tpu.memory_space<vmem>>, vector<16x128xf32>,
    return
  }
  func.func @transform_0(%arg0: i32) -> (i32, i32) {
    %c0_i32 = arith.constant 0 : i32
    %c0_i32_0 = arith.constant 0 : i32
    return %arg0, %c0_i32 : i32, i32
  }
  func.func @transform_1(%arg0: i32) -> (i32, i32) {
    %c0_i32 = arith.constant 0 : i32
    %c0_i32_0 = arith.constant 0 : i32
    return %arg0, %c0_i32 : i32, i32
  }
  func.func @transform_2(%arg0: i32) -> (i32, i32) {
    %c0_i32 = arith.constant 0 : i32
    %c0_i32_0 = arith.constant 0 : i32
    return %arg0, %c0_i32 : i32, i32
  }
  func.func @transform_3(%arg0: i32) -> (i32, i32) {
    %c0_i32 = arith.constant 0 : i32
    %c0_i32_0 = arith.constant 0 : i32
    return %arg0, %c0_i32 : i32, i32
  }
}

</mosaic_0001>

<llo_original>
// kernel: tpu_custom_call.1
$region0: #{tpu_custom_call.1}
  #allocation0 [shape = 'u32[]', space=smem, size = 0x4, offset = 0x4, fixed_abs, tag = 'smem constant byte address 0x4 - core index']
  #allocation1 [shape = 'u32[144,128]{1,0:T(1,128)}', space=vmem, size = 0x12000, scoped, tag = 'internal scratch']
  %s0 = inlined_call_operand.hbm [shape: f32[16,128], index: 0, kind: input, shape index: {}]
  %s1 = inlined_call_operand.hbm [shape: f32[16,128], index: 1, kind: input, shape index: {}]
  %s2 = inlined_call_operand.hbm [shape: f32[16,128], index: 2, kind: input, shape index: {}]
  %s3 = inlined_call_operand.hbm [shape: f32[16,128], index: 3, kind: output, shape index: {}]
  %s4 = sld [smem:[#allocation0]]
  $region34: #{tpu_custom_call.1} parent=0
    _
  %s6 = ssub.s32 1, %s4
  %s7 = scalar_select 0, %s6, %s4
  $region1: #{tpu_custom_call.1} parent=0
    #allocation2 [shape = 'u8[8192]{0}', space=vmem, size = 0x2000, scoped, tag = 'input window, operand 0, single buffered']
    #allocation3 [shape = 's32[1]{0}', space=sflag, size = 0x4, scoped, tag = 'scoped memory for tpu_custom_call.1']
    #allocation4 [shape = 's32[1]{0}', space=sflag, size = 0x4, scoped, tag = 'scoped memory for tpu_custom_call.1']
    #allocation5 [shape = 'u8[8192]{0}', space=vmem, size = 0x2000, scoped, tag = 'input window, operand 1, single buffered']
    #allocation6 [shape = 's32[1]{0}', space=sflag, size = 0x4, scoped, tag = 'scoped memory for tpu_custom_call.1']
    #allocation7 [shape = 'u8[8192]{0}', space=vmem, size = 0x2000, scoped, tag = 'input window, operand 2, single buffered']
    #allocation8 [shape = 'u8[8192]{0}', space=vmem, size = 0x2000, scoped, tag = 'output window, operand 0, single buffered']
    %8 = vsyncpa [#allocation3], 0
    %9 = vsyncpa [#allocation6], 0
    %10 = vsyncpa [#allocation4], 0
    // Predicated region
    $region2: #{tpu_custom_call.1} parent=1 // pred_check
      _
    $region3: #{tpu_custom_call.1} parent=1 // pred_check_branch
      %12 = sbr.rel (0) target = $region5
    $region4: #{tpu_custom_call.1} parent=1 // pred_region
      %s14 = ssub.s32 256, 256
      %15 = vsyncadd [#allocation3], %s14
      %s16 = sshll.u32 [#allocation2], 4
      %s17 = int_to_ptr.vmem [resolvable:$true] %s16
      %22 = dma.hbm_to_vmem [thread:$0]  %s0, 256, %s17, [#allocation3], 128, 128, 8
    $region5: #{tpu_custom_call.1} parent=1 // pred_fallthru
      _
    // Predicated region
    $region6: #{tpu_custom_call.1} parent=1 // pred_check
      _
    $region7: #{tpu_custom_call.1} parent=1 // pred_check_branch
      %24 = sbr.rel (0) target = $region9
    $region8: #{tpu_custom_call.1} parent=1 // pred_region
      %s26 = ssub.s32 256, 256
      %27 = vsyncadd [#allocation6], %s26
      %s28 = sshll.u32 [#allocation5], 4
      %s29 = int_to_ptr.vmem [resolvable:$true] %s28
      %34 = dma.hbm_to_vmem [thread:$0]  %s1, 256, %s29, [#allocation6], 128, 128, 8
    $region9: #{tpu_custom_call.1} parent=1 // pred_fallthru
      _
    // Predicated region
    $region10: #{tpu_custom_call.1} parent=1 // pred_check
      _
    $region11: #{tpu_custom_call.1} parent=1 // pred_check_branch
      %36 = sbr.rel (0) target = $region13
    $region12: #{tpu_custom_call.1} parent=1 // pred_region
      %s38 = ssub.s32 256, 256
      %39 = vsyncadd [#allocation6], %s38
      %s40 = sshll.u32 [#allocation7], 4
      %s41 = int_to_ptr.vmem [resolvable:$true] %s40
      %46 = dma.hbm_to_vmem [thread:$0]  %s2, 256, %s41, [#allocation6], 128, 128, 8
    $region13: #{tpu_custom_call.1} parent=1 // pred_fallthru
      _
    // Predicated region
    $region14: #{tpu_custom_call.1} parent=1 // pred_check
      _
    $region15: #{tpu_custom_call.1} parent=1 // pred_check_branch
      %48 = sbr.rel (0) target = $region17
    $region16: #{tpu_custom_call.1} parent=1 // pred_region
      %49 = dma.done [#allocation3], 256
    $region17: #{tpu_custom_call.1} parent=1 // pred_fallthru
      _
    // Predicated region
    $region18: #{tpu_custom_call.1} parent=1 // pred_check
      _
    $region19: #{tpu_custom_call.1} parent=1 // pred_check_branch
      %51 = sbr.rel (0) target = $region21
    $region20: #{tpu_custom_call.1} parent=1 // pred_region
      %52 = dma.done [#allocation6], 256
    $region21: #{tpu_custom_call.1} parent=1 // pred_fallthru
      _
    // Predicated region
    $region22: #{tpu_custom_call.1} parent=1 // pred_check
      _
    $region23: #{tpu_custom_call.1} parent=1 // pred_check_branch
      %54 = sbr.rel (0) target = $region25
    $region24: #{tpu_custom_call.1} parent=1 // pred_region
      %55 = dma.done [#allocation6], 256
    $region25: #{tpu_custom_call.1} parent=1 // pred_fallthru
      _
    %v56 = vld [vmem:[#allocation2] sm:$0xff]
    %v57 = vld [vmem:[#allocation2 + $0x8] sm:$0xff]
    %v58 = vld [vmem:[#allocation5] sm:$0xff]
    %v59 = vld [vmem:[#allocation5 + $0x8] sm:$0xff]
    %v60 = vld [vmem:[#allocation7] sm:$0xff]
    %v61 = vld [vmem:[#allocation7 + $0x8] sm:$0xff]
    %v62 = vmax.f32 %v56, 0.0
    %v63 = vmax.f32 %v57, 0.0
    %v64 = vmul.f32 %v56, %v58
    %v65 = vmul.f32 %v57, %v59
    %v66 = vsub.f32 %v62, %v64
    %v67 = vsub.f32 %v63, %v65
    %v68 = vand.u32 2147483647, %v56
    %v69 = vand.u32 2147483647, %v57
    %v70 = vsub.f32 0.0, %v68
    %v71 = vsub.f32 0.0, %v69
    %v72 = vmul.f32 %v70, 1.442695
    %v73 = vpow.pop %v72
    %v74 = vmul.f32 %v71, 1.442695
    %v75 = vpow.pop %v74
    %v76 = vadd.f32 %v73, 1.0
    %v77 = vlog2.pop %v76
    %v78 = vmul.f32 %v77, 0.6931472
    %v79 = vmul.f32 -0.5, %v73
    %v80 = vadd.f32 %v79, 1.0
    %v81 = vmul.f32 %v80, %v73
    %v82 = vand.u32 2147483647, %v73
    %vm83 = vcmp.lt.f32.partialorder %v82, 0.0004427343
    %v84 = vsel %vm83, %v81, %v78
    %v85 = vadd.f32 %v75, 1.0
    %v86 = vlog2.pop %v85
    %v87 = vmul.f32 %v86, 0.6931472
    %v88 = vmul.f32 -0.5, %v75
    %v89 = vadd.f32 %v88, 1.0
    %v90 = vmul.f32 %v89, %v75
    %v91 = vand.u32 2147483647, %v75
    %vm92 = vcmp.lt.f32.partialorder %v91, 0.0004427343
    %v93 = vsel %vm92, %v90, %v87
    %v94 = vadd.f32 %v66, %v84
    %v95 = vadd.f32 %v67, %v93
    %v96 = vmul.f32 %v60, %v94
    %v97 = vmul.f32 %v61, %v95
    %98 = vst [vmem:[#allocation8] sm:$0xff] %v96
    %99 = vst [vmem:[#allocation8 + $0x8] sm:$0xff] %v97
    // Predicated region
    $region26: #{tpu_custom_call.1} parent=1 // pred_check
      _
    $region27: #{tpu_custom_call.1} parent=1 // pred_check_branch
      %101 = sbr.rel (0) target = $region29
    $region28: #{tpu_custom_call.1} parent=1 // pred_region
      %s103 = ssub.s32 256, 256
      %104 = vsyncadd [#allocation4], %s103
      %s105 = sshll.u32 [#allocation8], 4
      %s106 = int_to_ptr.vmem [resolvable:$true] %s105
      %111 = dma.vmem_to_hbm [thread:$0]  %s106, 256, %s3, [#allocation4], 128, 128, 8
    $region29: #{tpu_custom_call.1} parent=1 // pred_fallthru
      _
    // Predicated region
    $region30: #{tpu_custom_call.1} parent=1 // pred_check
      _
    $region31: #{tpu_custom_call.1} parent=1 // pred_check_branch
      %113 = sbr.rel (0) target = $region33
    $region32: #{tpu_custom_call.1} parent=1 // pred_region
      %114 = dma.done [#allocation4], 256
    $region33: #{tpu_custom_call.1} parent=1 // pred_fallthru
      _
    %115 = vsyncpa [#allocation3], 1
    %116 = vsyncpa [#allocation6], 1
    %117 = vsyncpa [#allocation4], 1

</llo_original>
